<compile_context>
chip_gen: v7x
topology: tpu7x:2x2x1
jax: 0.10.0
libtpu: 0.0.40
codegen_flags: <defaults>
</compile_context>

<pallas_src>
import functools

import numpy as np

import jax
import jax.numpy as jnp
from jax.experimental import pallas as pl
from jax.experimental.pallas import tpu as pltpu


def _sinpe_kernel(x_ref, pe_ref, o_ref, *, batch):
    # x_ref: [tl, B*D]   pe_ref: [tl, D]   o_ref: [tl, B*D]
    pe = pe_ref[...].astype(jnp.float32)                            # (tl, D)
    if batch > 1:
        pe = jnp.concatenate([pe] * batch, axis=-1)                 # (tl, B*D) lane replicate
    o_ref[...] = (x_ref[...].astype(jnp.float32) + pe).astype(o_ref.dtype)


def _round_up(n, m):
    return ((n + m - 1) // m) * m


def sinusoidal_positional_embedding(x, pe):
    """x: [L, B, D] (seq, batch, dim).  pe: [n_position, d_hid] f32 buffer.

    Returns x + pe[:L, :D][:, None, :]  (same as the PyTorch forward).
    """
    L, B, D = x.shape
    n_pos, d_hid = pe.shape
    assert L <= n_pos, f"sequence length {L} exceeds positional table rows {n_pos}"
    assert D <= d_hid, f"feature dim {D} exceeds positional table cols {d_hid}"
    assert D % 128 == 0, "feature dim must be lane-aligned (multiple of 128)"
    if D != d_hid:
        pe = pe[:, :D]  # feature-dim trim only; no-op in the common D == d_hid case

    # Lane-dense 2D view of x / out: [L, B*D].  Row-major contiguous -> free reshape.
    x2 = x.reshape(L, B * D)

    # VMEM-budget-driven row tile.  Per L-row, double-buffered working set:
    #   2 * (x block + out block) in x.dtype  +  2 * pe block in f32.
    itemsize = jnp.dtype(x.dtype).itemsize
    bytes_per_row = 2 * (2 * B * D * itemsize + D * 4)
    budget = 12 * 1024 * 1024                 # under default scoped VMEM on v5e/v6e/v7x
    max_rows = max(8, (budget // bytes_per_row) // 8 * 8)
    block_l = min(max_rows, _round_up(L, 8), 1024)
    # Large L: keep >= 2 grid steps so the "parallel" axis can shard row tiles
    # across v7x's two TensorCores (no effect on single-TC v5e/v6e).
    if L > 512 and block_l >= L:
        block_l = max(8, _round_up(pl.cdiv(L, 2), 8))

    grid = (pl.cdiv(L, block_l),)

    grid_spec = pltpu.PrefetchScalarGridSpec(
        num_scalar_prefetch=0,
        grid=grid,
        in_specs=[
            pl.BlockSpec((block_l, B * D), lambda i: (i, 0)),
            # Raw [n_position, D] buffer read directly; block index i picks the
            # pe rows matching positions i*block_l .. i*block_l + block_l - 1.
            pl.BlockSpec((block_l, D), lambda i: (i, 0)),
        ],
        out_specs=pl.BlockSpec((block_l, B * D), lambda i: (i, 0)),
    )

    out2 = pl.pallas_call(
        functools.partial(_sinpe_kernel, batch=B),
        out_shape=jax.ShapeDtypeStruct((L, B * D), x.dtype),
        grid_spec=grid_spec,
        compiler_params=pltpu.CompilerParams(
            dimension_semantics=("parallel",)),
    )(x2, pe)

    return out2.reshape(L, B, D)


def _get_sinusoid_encoding_table(n_position, d_hid):
    """Exactly the module's buffer: pos / 10000^(2*(i//2)/d_hid), sin on even, cos on odd."""
    hid = np.arange(d_hid)
    denom = np.power(10000.0, 2.0 * (hid // 2) / d_hid)            # [d_hid]
    table = np.arange(n_position, dtype=np.float64)[:, None] / denom[None, :]
    table[:, 0::2] = np.sin(table[:, 0::2])
    table[:, 1::2] = np.cos(table[:, 1::2])
    return jnp.asarray(table, dtype=jnp.float32)                   # [n_position, d_hid]


def _reference(x, pe):
    L, B, D = x.shape
    return x + pe[:L, :D][:, None, :].astype(x.dtype)


if __name__ == "__main__":
    # Small shapes consistent with the module: seq L=8, batch B=2, dim D=512
    # (the module's d_hid; keeps the last dim lane-dense).
    L, B, D = 8, 2, 512
    key = jax.random.PRNGKey(0)
    x = jax.random.normal(key, (L, B, D), dtype=jnp.float32)

    pe = _get_sinusoid_encoding_table(1000, 512)                   # registered buffer

    out = sinusoidal_positional_embedding(x, pe)
    jax.block_until_ready(out)

    ref = _reference(x, pe)
    assert out.shape == (L, B, D), "shape mismatch"
    assert jnp.allclose(out, ref, atol=1e-6, rtol=1e-6), "output mismatch"

    print("KERNEL_OK")
</pallas_src>

<mosaic_0001>
module attributes {stable_mosaic.version = 11 : i64} {
  func.func @_sinpe_kernel(%arg0: i32, %arg1: memref<8x1024xf32, #tpu.memory_space<vmem>>, %arg2: memref<8x512xf32, #tpu.memory_space<vmem>>, %arg3: memref<8x1024xf32, #tpu.memory_space<vmem>>) attributes {dimension_semantics = [#tpu.dimension_semantics<parallel>], iteration_bounds = array<i64: 1>, scalar_prefetch = 0 : i64, scratch_operands = 0 : i64, tpu.core_type = #tpu.core_type<tc>, window_params = [{transform_indices = @transform_0, window_bounds = array<i64: 8, 1024>}, {transform_indices = @transform_1, window_bounds = array<i64: 8, 512>}, {transform_indices = @transform_2, window_bounds = array<i64: 8, 1024>}]} {
    %c0 = arith.constant 0 : index
    %c0_0 = arith.constant 0 : index
    %0 = vector.load %arg2[%c0, %c0_0] : memref<8x512xf32, #tpu.memory_space<vmem>>, vector<8x512xf32>
    %1 = tpu.concatenate %0, %0 in 1 : vector<8x512xf32>, vector<8x512xf32> -> vector<8x1024xf32>
    %c0_1 = arith.constant 0 : index
    %c0_2 = arith.constant 0 : index
    %2 = vector.load %arg1[%c0_1, %c0_2] : memref<8x1024xf32, #tpu.memory_space<vmem>>, vector<8x1024xf32>
    %3 = arith.addf %2, %1 : vector<8x1024xf32>
    %c0_3 = arith.constant 0 : index
    %c0_4 = arith.constant 0 : index
    %4 = vector.load %arg3[%c0_3, %c0_4] : memref<8x1024xf32, #tpu.memory_space<vmem>>, vector<8x1024xf32>
    tpu.vector_store %arg3[%c0_3, %c0_4], %3 {strides = array<i32>} : memref<8x1024xf32, #tpu.memory_space<vmem>>, vector<8x1024xf32>,
    return
  }
  func.func @transform_0(%arg0: i32) -> (i32, i32) {
    %c0_i32 = arith.constant 0 : i32
    %c0_i32_0 = arith.constant 0 : i32
    return %arg0, %c0_i32 : i32, i32
  }
  func.func @transform_1(%arg0: i32) -> (i32, i32) {
    %c0_i32 = arith.constant 0 : i32
    %c0_i32_0 = arith.constant 0 : i32
    return %arg0, %c0_i32 : i32, i32
  }
  func.func @transform_2(%arg0: i32) -> (i32, i32) {
    %c0_i32 = arith.constant 0 : i32
    %c0_i32_0 = arith.constant 0 : i32
    return %arg0, %c0_i32 : i32, i32
  }
}

</mosaic_0001>

<llo_original>
// kernel: tpu_custom_call.1
$region0: #{tpu_custom_call.1}
  #allocation0 [shape = 'u32[]', space=smem, size = 0x4, offset = 0x4, fixed_abs, tag = 'smem constant byte address 0x4 - core index']
  #allocation1 [shape = 'u32[144,128]{1,0:T(1,128)}', space=vmem, size = 0x12000, scoped, tag = 'internal scratch']
  %s0 = inlined_call_operand.hbm [shape: f32[8,1024], index: 0, kind: input, shape index: {}]
  %s1 = inlined_call_operand.hbm [shape: f32[1000,512], index: 1, kind: input, shape index: {}]
  %s2 = inlined_call_operand.hbm [shape: f32[8,1024], index: 2, kind: output, shape index: {}]
  %s3 = sld [smem:[#allocation0]]
  $region26: #{tpu_custom_call.1} parent=0
    _
  %s5 = ssub.s32 1, %s3
  %s6 = scalar_select 0, %s5, %s3
  $region1: #{tpu_custom_call.1} parent=0
    #allocation2 [shape = 'u8[32768]{0}', space=vmem, size = 0x8000, scoped, tag = 'input window, operand 0, single buffered']
    #allocation3 [shape = 's32[1]{0}', space=sflag, size = 0x4, scoped, tag = 'scoped memory for tpu_custom_call.1']
    #allocation4 [shape = 's32[1]{0}', space=sflag, size = 0x4, scoped, tag = 'scoped memory for tpu_custom_call.1']
    #allocation5 [shape = 'u8[16384]{0}', space=vmem, size = 0x4000, scoped, tag = 'input window, operand 1, single buffered']
    #allocation6 [shape = 's32[1]{0}', space=sflag, size = 0x4, scoped, tag = 'scoped memory for tpu_custom_call.1']
    #allocation7 [shape = 'u8[32768]{0}', space=vmem, size = 0x8000, scoped, tag = 'output window, operand 0, single buffered']
    %7 = vsyncpa [#allocation3], 0
    %8 = vsyncpa [#allocation6], 0
    %9 = vsyncpa [#allocation4], 0
    // Predicated region
    $region2: #{tpu_custom_call.1} parent=1 // pred_check
      _
    $region3: #{tpu_custom_call.1} parent=1 // pred_check_branch
      %11 = sbr.rel (0) target = $region5
    $region4: #{tpu_custom_call.1} parent=1 // pred_region
      %s13 = ssub.s32 1024, 1024
      %14 = vsyncadd [#allocation3], %s13
      %s16 = sshll.u32 [#allocation2], 4
      %s17 = int_to_ptr.vmem [resolvable:$true] %s16
      %19 = dma.hbm_to_vmem [thread:$0]  %s0, 1024, %s17, [#allocation3]
    $region5: #{tpu_custom_call.1} parent=1 // pred_fallthru
      _
    // Predicated region
    $region6: #{tpu_custom_call.1} parent=1 // pred_check
      _
    $region7: #{tpu_custom_call.1} parent=1 // pred_check_branch
      %21 = sbr.rel (0) target = $region9
    $region8: #{tpu_custom_call.1} parent=1 // pred_region
      %s23 = ssub.s32 512, 512
      %24 = vsyncadd [#allocation6], %s23
      %s26 = sshll.u32 [#allocation5], 4
      %s27 = int_to_ptr.vmem [resolvable:$true] %s26
      %29 = dma.hbm_to_vmem [thread:$0]  %s1, 512, %s27, [#allocation6]
    $region9: #{tpu_custom_call.1} parent=1 // pred_fallthru
      _
    // Predicated region
    $region10: #{tpu_custom_call.1} parent=1 // pred_check
      _
    $region11: #{tpu_custom_call.1} parent=1 // pred_check_branch
      %31 = sbr.rel (0) target = $region13
    $region12: #{tpu_custom_call.1} parent=1 // pred_region
      %32 = dma.done [#allocation3], 1024
    $region13: #{tpu_custom_call.1} parent=1 // pred_fallthru
      _
    // Predicated region
    $region14: #{tpu_custom_call.1} parent=1 // pred_check
      _
    $region15: #{tpu_custom_call.1} parent=1 // pred_check_branch
      %34 = sbr.rel (0) target = $region17
    $region16: #{tpu_custom_call.1} parent=1 // pred_region
      %35 = dma.done [#allocation6], 512
    $region17: #{tpu_custom_call.1} parent=1 // pred_fallthru
      _
    %v36 = vld [vmem:[#allocation5] sm:$0xff]
    %v37 = vld [vmem:[#allocation5 + $0x8] sm:$0xff]
    %v38 = vld [vmem:[#allocation5 + $0x10] sm:$0xff]
    %v39 = vld [vmem:[#allocation5 + $0x18] sm:$0xff]
    %v40 = vld [vmem:[#allocation2] sm:$0xff]
    %v41 = vld [vmem:[#allocation2 + $0x8] sm:$0xff]
    %v42 = vld [vmem:[#allocation2 + $0x10] sm:$0xff]
    %v43 = vld [vmem:[#allocation2 + $0x18] sm:$0xff]
    %v44 = vld [vmem:[#allocation2 + $0x20] sm:$0xff]
    %v45 = vld [vmem:[#allocation2 + $0x28] sm:$0xff]
    %v46 = vld [vmem:[#allocation2 + $0x30] sm:$0xff]
    %v47 = vld [vmem:[#allocation2 + $0x38] sm:$0xff]
    %v48 = vadd.f32 %v40, %v36
    %v49 = vadd.f32 %v41, %v37
    %v50 = vadd.f32 %v42, %v38
    %v51 = vadd.f32 %v43, %v39
    %v52 = vadd.f32 %v44, %v36
    %v53 = vadd.f32 %v45, %v37
    %v54 = vadd.f32 %v46, %v38
    %v55 = vadd.f32 %v47, %v39
    %56 = vst [vmem:[#allocation7] sm:$0xff] %v48
    %57 = vst [vmem:[#allocation7 + $0x8] sm:$0xff] %v49
    %58 = vst [vmem:[#allocation7 + $0x10] sm:$0xff] %v50
    %59 = vst [vmem:[#allocation7 + $0x18] sm:$0xff] %v51
    %60 = vst [vmem:[#allocation7 + $0x20] sm:$0xff] %v52
    %61 = vst [vmem:[#allocation7 + $0x28] sm:$0xff] %v53
    %62 = vst [vmem:[#allocation7 + $0x30] sm:$0xff] %v54
    %63 = vst [vmem:[#allocation7 + $0x38] sm:$0xff] %v55
    // Predicated region
    $region18: #{tpu_custom_call.1} parent=1 // pred_check
      _
    $region19: #{tpu_custom_call.1} parent=1 // pred_check_branch
      %65 = sbr.rel (0) target = $region21
    $region20: #{tpu_custom_call.1} parent=1 // pred_region
      %s67 = ssub.s32 1024, 1024
      %68 = vsyncadd [#allocation4], %s67
      %s70 = sshll.u32 [#allocation7], 4
      %s71 = int_to_ptr.vmem [resolvable:$true] %s70
      %73 = dma.vmem_to_hbm [thread:$0]  %s71, 1024, %s2, [#allocation4]
    $region21: #{tpu_custom_call.1} parent=1 // pred_fallthru
      _
    // Predicated region
    $region22: #{tpu_custom_call.1} parent=1 // pred_check
      _
    $region23: #{tpu_custom_call.1} parent=1 // pred_check_branch
      %75 = sbr.rel (0) target = $region25
    $region24: #{tpu_custom_call.1} parent=1 // pred_region
      %76 = dma.done [#allocation4], 1024
    $region25: #{tpu_custom_call.1} parent=1 // pred_fallthru
      _
    %77 = vsyncpa [#allocation3], 1
    %78 = vsyncpa [#allocation6], 1
    %79 = vsyncpa [#allocation4], 1

</llo_original>
